<compile_context>
chip_gen: v6e
topology: v6e:2x2x1
jax: 0.10.0
libtpu: 0.0.40
codegen_flags: <defaults>
</compile_context>

<pallas_src>
import functools
import math

import jax
import jax.numpy as jnp
from jax.experimental import pallas as pl
from jax.experimental.pallas import tpu as pltpu


_LN_EPS = 1e-5
_SUBLANE = 8              # f32 second-minor tile
_MIN_ROWS_TWO_STEPS = 64  # folded rows above which we force >=2 grid steps (v7x megacore)


def _round_up(x, m):
    return -(-x // m) * m


def _choose_fold(latent_dim, max_fold=8):
    """Largest fold <= max_fold so fold*latent_dim is a multiple of 128 lanes."""
    if latent_dim % 128 == 0:
        return 1
    fold = 128 // math.gcd(128, latent_dim)
    return fold if fold <= max_fold else 1


def _mlp_ln_kernel(x_ref, w1_ref, w2_ref, w3_ref, seg_ref, b12_ref, ln3_ref,
                   o_ref, *, inv_group):
    """One tile of fold-packed batch rows: 3-layer MLP + segmented LayerNorm."""
    x = x_ref[...]                           # (bb, fold*obs_dim)  f32

    b1 = b12_ref[0:1, :]                     # (1, fold*hidden)
    b2 = b12_ref[1:2, :]
    b3 = ln3_ref[0:1, :]                     # (1, fold*latent)
    gamma = ln3_ref[1:2, :]
    beta = ln3_ref[2:3, :]

    h1 = jnp.maximum(
        jnp.dot(x, w1_ref[...], preferred_element_type=jnp.float32) + b1, 0.0)
    h2 = jnp.maximum(
        jnp.dot(h1, w2_ref[...], preferred_element_type=jnp.float32) + b2, 0.0)
    z = jnp.dot(h2, w3_ref[...], preferred_element_type=jnp.float32) + b3

    # Segmented LayerNorm over latent-wide lane groups.  The 0/1 block-diag
    # segment matrix broadcasts each group's sum to every lane of its group
    # (MXU work).  Two-pass, mean-centered variance (matches torch.nn.LayerNorm
    # and avoids E[z^2]-E[z]^2 cancellation).
    seg = seg_ref[...]
    mean = jnp.dot(z, seg, preferred_element_type=jnp.float32) * inv_group
    c = z - mean
    var = jnp.dot(c * c, seg, preferred_element_type=jnp.float32) * inv_group
    z_hat = c * jax.lax.rsqrt(var + _LN_EPS)

    o_ref[...] = z_hat * gamma + beta        # lane-dense (fold*latent >= 128) store


@functools.partial(jax.jit, static_argnames=("max_block_b",))
def random_mlp_encoder(obs, w1, b1, w2, b2, w3, b3, gamma, beta, *,
                       max_block_b=8192):
    B, obs_dim = obs.shape
    hidden = w1.shape[1]
    latent_dim = w3.shape[1]
    fold = _choose_fold(latent_dim)

    obs = obs.astype(jnp.float32)            # no-op for f32 inputs

    # ---- batch-folding geometry (reshape is a free row-major reinterpret) ----
    padded_B = _round_up(B, fold)
    rows = padded_B // fold
    if rows < _SUBLANE:                      # keep matmul M >= one sublane tile
        rows = _SUBLANE
        padded_B = rows * fold
    if padded_B != B:                        # tiny (< fold*8 rows) pad, rare path
        obs = jnp.pad(obs, ((0, padded_B - B), (0, 0)))
    x = obs.reshape(rows, fold * obs_dim)

    # ---- block / grid sizing ----
    max_rows = max(_SUBLANE, (max_block_b // fold) // _SUBLANE * _SUBLANE)
    nsteps = pl.cdiv(rows, max_rows)
    if nsteps == 1 and rows >= _MIN_ROWS_TWO_STEPS:
        nsteps = 2                           # use both TensorCores on v7x
    elif nsteps > 1 and nsteps % 2:
        nsteps += 1                          # even step count balances 2 TCs
    block_rows = min(rows, _round_up(pl.cdiv(rows, nsteps), _SUBLANE))
    grid = (pl.cdiv(rows, block_rows),)      # ragged tail -> Pallas partial block

    # ---- fold parameters into block-diagonal / lane-tiled form (tiny, f32) ----
    f32 = jnp.float32
    eye = jnp.eye(fold, dtype=f32)
    w1f = jnp.kron(eye, w1.astype(f32))      # (fold*obs_dim, fold*hidden)
    w2f = jnp.kron(eye, w2.astype(f32))      # (fold*hidden,  fold*hidden)
    w3f = jnp.kron(eye, w3.astype(f32))      # (fold*hidden,  fold*latent)
    seg = jnp.kron(eye, jnp.ones((latent_dim, latent_dim), f32))
    b12 = jnp.concatenate([jnp.tile(b1.reshape(1, -1), (1, fold)),
                           jnp.tile(b2.reshape(1, -1), (1, fold))],
                          axis=0).astype(f32)                       # (2, fold*hidden)
    ln3 = jnp.concatenate([jnp.tile(b3.reshape(1, -1), (1, fold)),
                           jnp.tile(gamma.reshape(1, -1), (1, fold)),
                           jnp.tile(beta.reshape(1, -1), (1, fold))],
                          axis=0).astype(f32)                       # (3, fold*latent)

    fo, fh, fl = fold * obs_dim, fold * hidden, fold * latent_dim

    flops = 2 * rows * (fo * fh + fh * fh + fh * fl + 2 * fl * fl)
    bytes_accessed = (rows * fo * 4 + rows * fl * 4
                      + (w1f.size + w2f.size + w3f.size + seg.size
                         + b12.size + ln3.size) * 4)

    resident = lambda shape: pl.BlockSpec(shape, lambda i: (0, 0))

    out = pl.pallas_call(
        functools.partial(_mlp_ln_kernel, inv_group=1.0 / latent_dim),
        out_shape=jax.ShapeDtypeStruct((rows, fl), jnp.float32),
        grid_spec=pltpu.PrefetchScalarGridSpec(
            num_scalar_prefetch=0,
            grid=grid,
            in_specs=[
                pl.BlockSpec((block_rows, fo), lambda i: (i, 0)),   # folded obs tile
                resident((fo, fh)),      # block-diag W1 (resident, fetched once)
                resident((fh, fh)),      # block-diag W2
                resident((fh, fl)),      # block-diag W3
                resident((fl, fl)),      # LayerNorm segment matrix
                resident((2, fh)),       # [b1; b2]
                resident((3, fl)),       # [b3; gamma; beta]
            ],
            out_specs=pl.BlockSpec((block_rows, fl), lambda i: (i, 0)),
        ),
        compiler_params=pltpu.CompilerParams(
            dimension_semantics=("parallel",),
            vmem_limit_bytes=48 * 1024 * 1024,   # headroom for big tiles (v5e default is 16 MiB)
        ),
        cost_estimate=pl.CostEstimate(
            flops=flops, transcendentals=rows * fl,
            bytes_accessed=bytes_accessed),
    )(x, w1f, w2f, w3f, seg, b12, ln3)

    out = out.reshape(padded_B, latent_dim)  # free row-major reinterpret
    if padded_B != B:
        out = out[:B]
    return out


def _reference(obs, w1, b1, w2, b2, w3, b3, gamma, beta):
    hp = jax.lax.Precision.HIGHEST           # accurate f32 reference matmuls
    h1 = jnp.maximum(jnp.dot(obs, w1, precision=hp) + b1, 0.0)
    h2 = jnp.maximum(jnp.dot(h1, w2, precision=hp) + b2, 0.0)
    z = jnp.dot(h2, w3, precision=hp) + b3
    mean = jnp.mean(z, axis=-1, keepdims=True)
    var = jnp.mean((z - mean) ** 2, axis=-1, keepdims=True)
    return (z - mean) / jnp.sqrt(var + _LN_EPS) * gamma + beta


if __name__ == "__main__":
    # Small shapes consistent with the module: obs_shape=(16,), latent_dim=32.
    obs_dim, hidden, latent_dim = 16, 64, 32

    key = jax.random.PRNGKey(0)
    ks = jax.random.split(key, 8)

    # Deterministic synthetic parameters (random encoder; no checkpoint load).
    w1 = jax.random.normal(ks[1], (obs_dim, hidden), jnp.float32) * 0.1
    b1 = jax.random.normal(ks[2], (1, hidden), jnp.float32) * 0.01
    w2 = jax.random.normal(ks[3], (hidden, hidden), jnp.float32) * 0.1
    b2 = jax.random.normal(ks[4], (1, hidden), jnp.float32) * 0.01
    w3 = jax.random.normal(ks[5], (hidden, latent_dim), jnp.float32) * 0.1
    b3 = jax.random.normal(ks[6], (1, latent_dim), jnp.float32) * 0.01
    gamma = jnp.ones((1, latent_dim), jnp.float32)   # LayerNorm default init
    beta = jnp.zeros((1, latent_dim), jnp.float32)

    # B=16: aligned tiny batch.  B=20: exercises the pad-to-fold path.
    # B=300: multi-step grid with a Pallas partial (masked) last block.
    for B in (16, 20, 300):
        obs = jax.random.normal(ks[0], (B, obs_dim), dtype=jnp.float32)
        out = random_mlp_encoder(obs, w1, b1, w2, b2, w3, b3, gamma, beta)
        out = jax.block_until_ready(out)

        ref = _reference(obs, w1, b1, w2, b2, w3, b3, gamma, beta)
        assert out.shape == (B, latent_dim)
        # All-f32 kernel; slack covers MXU f32 pass decomposition details
        # (observed error is far smaller; the old bf16 path needed 5e-2).
        assert jnp.allclose(out, ref, atol=1e-2, rtol=1e-2), f"mismatch B={B}"

    print("KERNEL_OK")
</pallas_src>

<mosaic_0001>
module attributes {stable_mosaic.version = 11 : i64} {
  func.func @_mlp_ln_kernel(%arg0: i32, %arg1: memref<8x64xf32, #tpu.memory_space<vmem>>, %arg2: memref<64x256xf32, #tpu.memory_space<vmem>>, %arg3: memref<256x256xf32, #tpu.memory_space<vmem>>, %arg4: memref<256x128xf32, #tpu.memory_space<vmem>>, %arg5: memref<128x128xf32, #tpu.memory_space<vmem>>, %arg6: memref<2x256xf32, #tpu.memory_space<vmem>>, %arg7: memref<3x128xf32, #tpu.memory_space<vmem>>, %arg8: memref<8x128xf32, #tpu.memory_space<vmem>>) attributes {dimension_semantics = [#tpu.dimension_semantics<parallel>], iteration_bounds = array<i64: 1>, scalar_prefetch = 0 : i64, scratch_operands = 0 : i64, tpu.core_type = #tpu.core_type<tc>, window_params = [{transform_indices = @transform_0, window_bounds = array<i64: 8, 64>}, {pipeline_mode = #tpu.pipeline_mode<synchronous>, transform_indices = @transform_1, window_bounds = array<i64: 64, 256>}, {pipeline_mode = #tpu.pipeline_mode<synchronous>, transform_indices = @transform_2, window_bounds = array<i64: 256, 256>}, {pipeline_mode = #tpu.pipeline_mode<synchronous>, transform_indices = @transform_3, window_bounds = array<i64: 256, 128>}, {pipeline_mode = #tpu.pipeline_mode<synchronous>, transform_indices = @transform_4, window_bounds = array<i64: 128, 128>}, {pipeline_mode = #tpu.pipeline_mode<synchronous>, transform_indices = @transform_5, window_bounds = array<i64: 2, 256>}, {pipeline_mode = #tpu.pipeline_mode<synchronous>, transform_indices = @transform_6, window_bounds = array<i64: 3, 128>}, {transform_indices = @transform_7, window_bounds = array<i64: 8, 128>}]} {
    %c0 = arith.constant 0 : index
    %c0_0 = arith.constant 0 : index
    %0 = vector.load %arg1[%c0, %c0_0] : memref<8x64xf32, #tpu.memory_space<vmem>>, vector<8x64xf32>
    %c0_1 = arith.constant 0 : index
    %c0_2 = arith.constant 0 : index
    %1 = vector.load %arg6[%c0_1, %c0_2] : memref<2x256xf32, #tpu.memory_space<vmem>>, vector<1x256xf32>
    %c1 = arith.constant 1 : index
    %c0_3 = arith.constant 0 : index
    %2 = vector.load %arg6[%c1, %c0_3] : memref<2x256xf32, #tpu.memory_space<vmem>>, vector<1x256xf32>
    %c0_4 = arith.constant 0 : index
    %c0_5 = arith.constant 0 : index
    %3 = vector.load %arg7[%c0_4, %c0_5] : memref<3x128xf32, #tpu.memory_space<vmem>>, vector<1x128xf32>
    %c1_6 = arith.constant 1 : index
    %c0_7 = arith.constant 0 : index
    %4 = vector.load %arg7[%c1_6, %c0_7] : memref<3x128xf32, #tpu.memory_space<vmem>>, vector<1x128xf32>
    %c2 = arith.constant 2 : index
    %c0_8 = arith.constant 0 : index
    %5 = vector.load %arg7[%c2, %c0_8] : memref<3x128xf32, #tpu.memory_space<vmem>>, vector<1x128xf32>
    %c0_9 = arith.constant 0 : index
    %c0_10 = arith.constant 0 : index
    %6 = vector.load %arg2[%c0_9, %c0_10] : memref<64x256xf32, #tpu.memory_space<vmem>>, vector<64x256xf32>
    %cst = arith.constant dense<0.000000e+00> : vector<8x256xf32>
    %7 = tpu.matmul %0, %6, %cst {dimension_numbers = #tpu.dot_dimension_numbers<[1], [0], [0], [1], [0, 0, 1, 1], [], []>} : vector<8x64xf32>, vector<64x256xf32>, vector<8x256xf32> -> vector<8x256xf32>
    %8 = vector.broadcast %1 : vector<1x256xf32> to vector<8x256xf32>
    %9 = arith.addf %7, %8 : vector<8x256xf32>
    %cst_11 = arith.constant 0.000000e+00 : f32
    %10 = vector.broadcast %cst_11 : f32 to vector<8x256xf32>
    %11 = arith.maximumf %9, %10 : vector<8x256xf32>
    %c0_12 = arith.constant 0 : index
    %c0_13 = arith.constant 0 : index
    %12 = vector.load %arg3[%c0_12, %c0_13] : memref<256x256xf32, #tpu.memory_space<vmem>>, vector<256x256xf32>
    %cst_14 = arith.constant dense<0.000000e+00> : vector<8x256xf32>
    %13 = tpu.matmul %11, %12, %cst_14 {dimension_numbers = #tpu.dot_dimension_numbers<[1], [0], [0], [1], [0, 0, 1, 1], [], []>} : vector<8x256xf32>, vector<256x256xf32>, vector<8x256xf32> -> vector<8x256xf32>
    %14 = vector.broadcast %2 : vector<1x256xf32> to vector<8x256xf32>
    %15 = arith.addf %13, %14 : vector<8x256xf32>
    %cst_15 = arith.constant 0.000000e+00 : f32
    %16 = vector.broadcast %cst_15 : f32 to vector<8x256xf32>
    %17 = arith.maximumf %15, %16 : vector<8x256xf32>
    %c0_16 = arith.constant 0 : index
    %c0_17 = arith.constant 0 : index
    %18 = vector.load %arg4[%c0_16, %c0_17] : memref<256x128xf32, #tpu.memory_space<vmem>>, vector<256x128xf32>
    %cst_18 = arith.constant dense<0.000000e+00> : vector<8x128xf32>
    %19 = tpu.matmul %17, %18, %cst_18 {dimension_numbers = #tpu.dot_dimension_numbers<[1], [0], [0], [1], [0, 0, 1, 1], [], []>} : vector<8x256xf32>, vector<256x128xf32>, vector<8x128xf32> -> vector<8x128xf32>
    %20 = vector.broadcast %3 : vector<1x128xf32> to vector<8x128xf32>
    %21 = arith.addf %19, %20 : vector<8x128xf32>
    %c0_19 = arith.constant 0 : index
    %c0_20 = arith.constant 0 : index
    %22 = vector.load %arg5[%c0_19, %c0_20] : memref<128x128xf32, #tpu.memory_space<vmem>>, vector<128x128xf32>
    %cst_21 = arith.constant dense<0.000000e+00> : vector<8x128xf32>
    %23 = tpu.matmul %21, %22, %cst_21 {dimension_numbers = #tpu.dot_dimension_numbers<[1], [0], [0], [1], [0, 0, 1, 1], [], []>} : vector<8x128xf32>, vector<128x128xf32>, vector<8x128xf32> -> vector<8x128xf32>
    %cst_22 = arith.constant 3.125000e-02 : f32
    %24 = vector.broadcast %cst_22 : f32 to vector<8x128xf32>
    %25 = arith.mulf %23, %24 : vector<8x128xf32>
    %26 = arith.subf %21, %25 : vector<8x128xf32>
    %27 = arith.mulf %26, %26 : vector<8x128xf32>
    %cst_23 = arith.constant dense<0.000000e+00> : vector<8x128xf32>
    %28 = tpu.matmul %27, %22, %cst_23 {dimension_numbers = #tpu.dot_dimension_numbers<[1], [0], [0], [1], [0, 0, 1, 1], [], []>} : vector<8x128xf32>, vector<128x128xf32>, vector<8x128xf32> -> vector<8x128xf32>
    %cst_24 = arith.constant 3.125000e-02 : f32
    %29 = vector.broadcast %cst_24 : f32 to vector<8x128xf32>
    %30 = arith.mulf %28, %29 : vector<8x128xf32>
    %cst_25 = arith.constant 9.99999974E-6 : f32
    %31 = vector.broadcast %cst_25 : f32 to vector<8x128xf32>
    %32 = arith.addf %30, %31 : vector<8x128xf32>
    %33 = math.rsqrt %32 : vector<8x128xf32>
    %34 = arith.mulf %26, %33 : vector<8x128xf32>
    %35 = vector.broadcast %4 : vector<1x128xf32> to vector<8x128xf32>
    %36 = arith.mulf %34, %35 : vector<8x128xf32>
    %37 = vector.broadcast %5 : vector<1x128xf32> to vector<8x128xf32>
    %38 = arith.addf %36, %37 : vector<8x128xf32>
    %c0_26 = arith.constant 0 : index
    %c0_27 = arith.constant 0 : index
    %39 = vector.load %arg8[%c0_26, %c0_27] : memref<8x128xf32, #tpu.memory_space<vmem>>, vector<8x128xf32>
    tpu.vector_store %arg8[%c0_26, %c0_27], %38 {strides = array<i32>} : memref<8x128xf32, #tpu.memory_space<vmem>>, vector<8x128xf32>,
    return
  }
  func.func @transform_0(%arg0: i32) -> (i32, i32) {
    %c0_i32 = arith.constant 0 : i32
    %c0_i32_0 = arith.constant 0 : i32
    return %arg0, %c0_i32 : i32, i32
  }
  func.func @transform_1(%arg0: i32) -> (i32, i32) {
    %c0_i32 = arith.constant 0 : i32
    %c0_i32_0 = arith.constant 0 : i32
    %c0_i32_1 = arith.constant 0 : i32
    return %c0_i32, %c0_i32_0 : i32, i32
  }
  func.func @transform_2(%arg0: i32) -> (i32, i32) {
    %c0_i32 = arith.constant 0 : i32
    %c0_i32_0 = arith.constant 0 : i32
    %c0_i32_1 = arith.constant 0 : i32
    return %c0_i32, %c0_i32_0 : i32, i32
  }
  func.func @transform_3(%arg0: i32) -> (i32, i32) {
    %c0_i32 = arith.constant 0 : i32
    %c0_i32_0 = arith.constant 0 : i32
    %c0_i32_1 = arith.constant 0 : i32
    return %c0_i32, %c0_i32_0 : i32, i32
  }
  func.func @transform_4(%arg0: i32) -> (i32, i32) {
    %c0_i32 = arith.constant 0 : i32
    %c0_i32_0 = arith.constant 0 : i32
    %c0_i32_1 = arith.constant 0 : i32
    return %c0_i32, %c0_i32_0 : i32, i32
  }
  func.func @transform_5(%arg0: i32) -> (i32, i32) {
    %c0_i32 = arith.constant 0 : i32
    %c0_i32_0 = arith.constant 0 : i32
    %c0_i32_1 = arith.constant 0 : i32
    return %c0_i32, %c0_i32_0 : i32, i32
  }
  func.func @transform_6(%arg0: i32) -> (i32, i32) {
    %c0_i32 = arith.constant 0 : i32
    %c0_i32_0 = arith.constant 0 : i32
    %c0_i32_1 = arith.constant 0 : i32
    return %c0_i32, %c0_i32_0 : i32, i32
  }
  func.func @transform_7(%arg0: i32) -> (i32, i32) {
    %c0_i32 = arith.constant 0 : i32
    %c0_i32_0 = arith.constant 0 : i32
    return %arg0, %c0_i32 : i32, i32
  }
}

</mosaic_0001>

<llo_original>
// kernel: random_mlp_encoder.1
$region0: #{random_mlp_encoder.1}
  #allocation0 [shape = 'u32[]', space=smem, size = 0x4, offset = 0x4, fixed_abs, tag = 'smem constant byte address 0x4 - core index']
  #allocation1 [shape = 'u32[144,128]{1,0:T(1,128)}', space=vmem, size = 0x12000, scoped, tag = 'internal scratch']
  %s0 = inlined_call_operand.vmem [shape: f32[8,64], index: 0, kind: input, shape index: {}]
  %s1 = inlined_call_operand.vmem [shape: f32[64,256], index: 1, kind: input, shape index: {}]
  %s2 = inlined_call_operand.vmem [shape: f32[256,256], index: 2, kind: input, shape index: {}]
  %s3 = inlined_call_operand.vmem [shape: f32[256,128], index: 3, kind: input, shape index: {}]
  %s4 = inlined_call_operand.vmem [shape: f32[128,128], index: 4, kind: input, shape index: {}]
  %s5 = inlined_call_operand.vmem [shape: f32[2,256], index: 5, kind: input, shape index: {}]
  %s6 = inlined_call_operand.vmem [shape: f32[3,128], index: 6, kind: input, shape index: {}]
  %s7 = inlined_call_operand.vmem [shape: f32[8,128], index: 7, kind: output, shape index: {}]
  %s8 = sld [smem:[#allocation0]]
  $region38: #{random_mlp_encoder.1} parent=0
    _
  %s10 = ssub.s32 1, %s8
  %s11 = scalar_select 0, %s10, %s8
  // Predicated region
  $region2: #{random_mlp_encoder.1} parent=0 // pred_check
    _
  $region3: #{random_mlp_encoder.1} parent=0 // pred_check_branch
    %13 = sbr.rel (0) target = $region5
  $region4: #{random_mlp_encoder.1} parent=0 // pred_region
    _
  $region5: #{random_mlp_encoder.1} parent=0 // pred_fallthru
    _
  // Predicated region
  $region6: #{random_mlp_encoder.1} parent=0 // pred_check
    _
  $region7: #{random_mlp_encoder.1} parent=0 // pred_check_branch
    %15 = sbr.rel (0) target = $region9
  $region8: #{random_mlp_encoder.1} parent=0 // pred_region
    _
  $region9: #{random_mlp_encoder.1} parent=0 // pred_fallthru
    _
  // Predicated region
  $region10: #{random_mlp_encoder.1} parent=0 // pred_check
    _
  $region11: #{random_mlp_encoder.1} parent=0 // pred_check_branch
    %17 = sbr.rel (0) target = $region13
  $region12: #{random_mlp_encoder.1} parent=0 // pred_region
    _
  $region13: #{random_mlp_encoder.1} parent=0 // pred_fallthru
    _
  // Predicated region
  $region14: #{random_mlp_encoder.1} parent=0 // pred_check
    _
  $region15: #{random_mlp_encoder.1} parent=0 // pred_check_branch
    %19 = sbr.rel (0) target = $region17
  $region16: #{random_mlp_encoder.1} parent=0 // pred_region
    _
  $region17: #{random_mlp_encoder.1} parent=0 // pred_fallthru
    _
  // Predicated region
  $region18: #{random_mlp_encoder.1} parent=0 // pred_check
    _
  $region19: #{random_mlp_encoder.1} parent=0 // pred_check_branch
    %21 = sbr.rel (0) target = $region21
  $region20: #{random_mlp_encoder.1} parent=0 // pred_region
    _
  $region21: #{random_mlp_encoder.1} parent=0 // pred_fallthru
    _
  // Predicated region
  $region22: #{random_mlp_encoder.1} parent=0 // pred_check
    _
  $region23: #{random_mlp_encoder.1} parent=0 // pred_check_branch
    %23 = sbr.rel (0) target = $region25
  $region24: #{random_mlp_encoder.1} parent=0 // pred_region
    _
  $region25: #{random_mlp_encoder.1} parent=0 // pred_fallthru
    _
  // Predicated region
  $region26: #{random_mlp_encoder.1} parent=0 // pred_check
    _
  $region27: #{random_mlp_encoder.1} parent=0 // pred_check_branch
    %25 = sbr.rel (0) target = $region29
  $region28: #{random_mlp_encoder.1} parent=0 // pred_region
    _
  $region29: #{random_mlp_encoder.1} parent=0 // pred_fallthru
    _
  %v26 = vld [vmem:[%s0] sm:$0xff]
  %v27 = vld [vmem:[%s5] ss:$2 sm:$0x3]
  %s28 = scalar_lea.vmem %s5, 1
  %v29 = vld [vmem:[%s28] ss:$2 sm:$0x3]
  %v30 = vld [vmem:[%s6] sm:$0x1]
  %v31 = vld [vmem:[%s6 + $0x1] sm:$0x1]
  %v32 = vld [vmem:[%s6 + $0x2] sm:$0x1]
  %v33 = vld [vmem:[%s1] sm:$0xff]
  %v34 = vld [vmem:[%s1 + $0x8] sm:$0xff]
  %v35 = vld [vmem:[%s1 + $0x10] sm:$0xff]
  %v36 = vld [vmem:[%s1 + $0x18] sm:$0xff]
  %v37 = vld [vmem:[%s1 + $0x20] sm:$0xff]
  %v38 = vld [vmem:[%s1 + $0x28] sm:$0xff]
  %v39 = vld [vmem:[%s1 + $0x30] sm:$0xff]
  %v40 = vld [vmem:[%s1 + $0x38] sm:$0xff]
  %v41 = vld [vmem:[%s1 + $0x40] sm:$0xff]
  %v42 = vld [vmem:[%s1 + $0x48] sm:$0xff]
  %v43 = vld [vmem:[%s1 + $0x50] sm:$0xff]
  %v44 = vld [vmem:[%s1 + $0x58] sm:$0xff]
  %v45 = vld [vmem:[%s1 + $0x60] sm:$0xff]
  %v46 = vld [vmem:[%s1 + $0x68] sm:$0xff]
  %v47 = vld [vmem:[%s1 + $0x70] sm:$0xff]
  %v48 = vld [vmem:[%s1 + $0x78] sm:$0xff]
  %v50 = vlaneseq
  %v51 = vshrl.u32 %v50, 7
  %v52 = vsub.s32 0, %v51
  %v53 = vrot.slane %v27, %v52
  %v54 = vlaneseq
  %v55 = vshrl.u32 %v54, 7
  %v56 = vsub.s32 1, %v55
  %v57 = vrot.slane %v27, %v56
  %vm60 = vcmask 523264
  %v62 = vsel %vm60, %v26, 0
  %64 = vmatprep.subr.mxu0 0.0
  %65 = vmatpush1.msra.mxu0 0.0
  %66 = vmatprep.subr.mxu0 0.0
  %67 = vmatpush1.msra.mxu0 0.0
  %68 = vmatprep.subr.mxu0 0.0
  %69 = vmatpush1.msra.mxu0 0.0
  %70 = vmatprep.subr.mxu0 0.0
  %71 = vmatpush1.msra.mxu0 0.0
  %72 = vmatprep.subr.mxu0 0.0
  %73 = vmatpush1.msra.mxu0 0.0
  %74 = vmatprep.subr.mxu0 0.0
  %75 = vmatpush1.msra.mxu0 0.0
  %76 = vmatprep.subr.mxu0 0.0
  %77 = vmatpush1.msra.mxu0 0.0
  %78 = vmatprep.subr.mxu0 0.0
  %79 = vmatpush1.msra.mxu0 0.0
  %80 = vmatprep.subr.mxu0 %v48
  %81 = vmatpush1.msra.mxu0 %v47
  %82 = vmatprep.subr.mxu0 %v46
  %83 = vmatpush1.msra.mxu0 %v45
  %84 = vmatprep.subr.mxu0 %v44
  %85 = vmatpush1.msra.mxu0 %v43
  %86 = vmatprep.subr.mxu0 %v42
  %87 = vmatpush1.msra.mxu0 %v41
  %88 = vmatprep.subr.mxu0 %v40
  %89 = vmatpush1.msra.mxu0 %v39
  %90 = vmatprep.subr.mxu0 %v38
  %91 = vmatpush1.msra.mxu0 %v37
  %92 = vmatprep.subr.mxu0 %v36
  %93 = vmatpush1.msra.mxu0 %v35
  %94 = vmatprep.subr.mxu0 %v34
  %95 = vmatpush1.msra.mxu0 %v33
  %96 = vmatprep.subr.mxu0 0.0
  %97 = vmatpush2.msra.mxu0 0.0
  %98 = vmatprep.subr.mxu0 0.0
  %99 = vmatpush2.msra.mxu0 0.0
  %100 = vmatprep.subr.mxu0 0.0
  %101 = vmatpush2.msra.mxu0 0.0
  %102 = vmatprep.subr.mxu0 0.0
  %103 = vmatpush2.msra.mxu0 0.0
  %104 = vmatprep.subr.mxu0 0.0
  %105 = vmatpush2.msra.mxu0 0.0
  %106 = vmatprep.subr.mxu0 0.0
  %107 = vmatpush2.msra.mxu0 0.0
  %108 = vmatprep.subr.mxu0 0.0
  %109 = vmatpush2.msra.mxu0 0.0
  %110 = vmatprep.subr.mxu0 0.0
  %111 = vmatpush2.msra.mxu0 0.0
  %112 = vmatprep.subr.mxu0 0.0
  %113 = vmatpush2.msra.mxu0 0.0
  %114 = vmatprep.subr.mxu0 0.0
  %115 = vmatpush2.msra.mxu0 0.0
  %116 = vmatprep.subr.mxu0 0.0
  %117 = vmatpush2.msra.mxu0 0.0
  %118 = vmatprep.subr.mxu0 0.0
  %119 = vmatpush2.msra.mxu0 0.0
  %120 = vmatprep.subr.mxu0 0.0
  %121 = vmatpush2.msra.mxu0 0.0
  %122 = vmatprep.subr.mxu0 0.0
  %123 = vmatpush2.msra.mxu0 0.0
  %124 = vmatprep.subr.mxu0 0.0
  %125 = vmatpush2.msra.mxu0 0.0
  %126 = vmatprep.subr.mxu0 0.0
  %127 = vmatpush2.msra.mxu0 0.0
  %128 = vmatprep.mubr.f32.mxu0 0.0
  %129 = vmatmul.mubr.f32.gmra.mxu0 %v62
  %v130 = vpop.f32.mrf.mxu0
  %v131 = vadd.f32 %v53, %v130
  %v132 = vpop.f32.mrf.mxu0
  %v133 = vadd.f32 %v57, %v132
  %134 = vdwg.mxu0
  %v135 = vmax.f32 %v131, 0.0
  %v136 = vmax.f32 %v133, 0.0
  %v137 = vld [vmem:[%s2] sm:$0xff]
  %v138 = vld [vmem:[%s2 + $0x8] sm:$0xff]
  %v139 = vld [vmem:[%s2 + $0x10] sm:$0xff]
  %v140 = vld [vmem:[%s2 + $0x18] sm:$0xff]
  %v141 = vld [vmem:[%s2 + $0x20] sm:$0xff]
  %v142 = vld [vmem:[%s2 + $0x28] sm:$0xff]
  %v143 = vld [vmem:[%s2 + $0x30] sm:$0xff]
  %v144 = vld [vmem:[%s2 + $0x38] sm:$0xff]
  %v145 = vld [vmem:[%s2 + $0x40] sm:$0xff]
  %v146 = vld [vmem:[%s2 + $0x48] sm:$0xff]
  %v147 = vld [vmem:[%s2 + $0x50] sm:$0xff]
  %v148 = vld [vmem:[%s2 + $0x58] sm:$0xff]
  %v149 = vld [vmem:[%s2 + $0x60] sm:$0xff]
  %v150 = vld [vmem:[%s2 + $0x68] sm:$0xff]
  %v151 = vld [vmem:[%s2 + $0x70] sm:$0xff]
  %v152 = vld [vmem:[%s2 + $0x78] sm:$0xff]
  %v153 = vld [vmem:[%s2 + $0x80] sm:$0xff]
  %v154 = vld [vmem:[%s2 + $0x88] sm:$0xff]
  %v155 = vld [vmem:[%s2 + $0x90] sm:$0xff]
  %v156 = vld [vmem:[%s2 + $0x98] sm:$0xff]
  %v157 = vld [vmem:[%s2 + $0xa0] sm:$0xff]
  %v158 = vld [vmem:[%s2 + $0xa8] sm:$0xff]
  %v159 = vld [vmem:[%s2 + $0xb0] sm:$0xff]
  %v160 = vld [vmem:[%s2 + $0xb8] sm:$0xff]
  %v161 = vld [vmem:[%s2 + $0xc0] sm:$0xff]
  %v162 = vld [vmem:[%s2 + $0xc8] sm:$0xff]
  %v163 = vld [vmem:[%s2 + $0xd0] sm:$0xff]
  %v164 = vld [vmem:[%s2 + $0xd8] sm:$0xff]
  %v165 = vld [vmem:[%s2 + $0xe0] sm:$0xff]
  %v166 = vld [vmem:[%s2 + $0xe8] sm:$0xff]
  %v167 = vld [vmem:[%s2 + $0xf0] sm:$0xff]
  %v168 = vld [vmem:[%s2 + $0xf8] sm:$0xff]
  %v169 = vld [vmem:[%s2 + $0x100] sm:$0xff]
  %v170 = vld [vmem:[%s2 + $0x108] sm:$0xff]
  %v171 = vld [vmem:[%s2 + $0x110] sm:$0xff]
  %v172 = vld [vmem:[%s2 + $0x118] sm:$0xff]
  %v173 = vld [vmem:[%s2 + $0x120] sm:$0xff]
  %v174 = vld [vmem:[%s2 + $0x128] sm:$0xff]
  %v175 = vld [vmem:[%s2 + $0x130] sm:$0xff]
  %v176 = vld [vmem:[%s2 + $0x138] sm:$0xff]
  %v177 = vld [vmem:[%s2 + $0x140] sm:$0xff]
  %v178 = vld [vmem:[%s2 + $0x148] sm:$0xff]
  %v179 = vld [vmem:[%s2 + $0x150] sm:$0xff]
  %v180 = vld [vmem:[%s2 + $0x158] sm:$0xff]
  %v181 = vld [vmem:[%s2 + $0x160] sm:$0xff]
  %v182 = vld [vmem:[%s2 + $0x168] sm:$0xff]
  %v183 = vld [vmem:[%s2 + $0x170] sm:$0xff]
  %v184 = vld [vmem:[%s2 + $0x178] sm:$0xff]
  %v185 = vld [vmem:[%s2 + $0x180] sm:$0xff]
  %v186 = vld [vmem:[%s2 + $0x188] sm:$0xff]
  %v187 = vld [vmem:[%s2 + $0x190] sm:$0xff]
  %v188 = vld [vmem:[%s2 + $0x198] sm:$0xff]
  %v189 = vld [vmem:[%s2 + $0x1a0] sm:$0xff]
  %v190 = vld [vmem:[%s2 + $0x1a8] sm:$0xff]
  %v191 = vld [vmem:[%s2 + $0x1b0] sm:$0xff]
  %v192 = vld [vmem:[%s2 + $0x1b8] sm:$0xff]
  %v193 = vld [vmem:[%s2 + $0x1c0] sm:$0xff]
  %v194 = vld [vmem:[%s2 + $0x1c8] sm:$0xff]
  %v195 = vld [vmem:[%s2 + $0x1d0] sm:$0xff]
  %v196 = vld [vmem:[%s2 + $0x1d8] sm:$0xff]
  %v197 = vld [vmem:[%s2 + $0x1e0] sm:$0xff]
  %v198 = vld [vmem:[%s2 + $0x1e8] sm:$0xff]
  %v199 = vld [vmem:[%s2 + $0x1f0] sm:$0xff]
  %v200 = vld [vmem:[%s2 + $0x1f8] sm:$0xff]
  %v202 = vlaneseq
  %v203 = vshrl.u32 %v202, 7
  %v204 = vsub.s32 0, %v203
  %v205 = vrot.slane %v29, %v204
  %v206 = vlaneseq
  %v207 = vshrl.u32 %v206, 7
  %v208 = vsub.s32 1, %v207
  %v209 = vrot.slane %v29, %v208
  %212 = vmatprep.subr.mxu0 %v168
  %213 = vmatpush1.msra.mxu0 %v167
  %214 = vmatprep.subr.mxu0 %v166
  %215 = vmatpush1.msra.mxu0 %v165
  %216 = vmatprep.subr.mxu0 %v164
  %217 = vmatpush1.msra.mxu0 %v163
  %218 = vmatprep.subr.mxu0 %v162
  %219 = vmatpush1.msra.mxu0 %v161
  %220 = vmatprep.subr.mxu0 %v160
  %221 = vmatpush1.msra.mxu0 %v159
  %222 = vmatprep.subr.mxu0 %v158
  %223 = vmatpush1.msra.mxu0 %v157
  %224 = vmatprep.subr.mxu0 %v156
  %225 = vmatpush1.msra.mxu0 %v155
  %226 = vmatprep.subr.mxu0 %v154
  %227 = vmatpush1.msra.mxu0 %v153
  %228 = vmatprep.subr.mxu0 %v152
  %229 = vmatpush1.msra.mxu0 %v151
  %230 = vmatprep.subr.mxu0 %v150
  %231 = vmatpush1.msra.mxu0 %v149
  %232 = vmatprep.subr.mxu0 %v148
  %233 = vmatpush1.msra.mxu0 %v147
  %234 = vmatprep.subr.mxu0 %v146
  %235 = vmatpush1.msra.mxu0 %v145
  %236 = vmatprep.subr.mxu0 %v144
  %237 = vmatpush1.msra.mxu0 %v143
  %238 = vmatprep.subr.mxu0 %v142
  %239 = vmatpush1.msra.mxu0 %v141
  %240 = vmatprep.subr.mxu0 %v140
  %241 = vmatpush1.msra.mxu0 %v139
  %242 = vmatprep.subr.mxu0 %v138
  %243 = vmatpush1.msra.mxu0 %v137
  %244 = vmatprep.subr.mxu0 %v200
  %245 = vmatpush2.msra.mxu0 %v199
  %246 = vmatprep.subr.mxu0 %v198
  %247 = vmatpush2.msra.mxu0 %v197
  %248 = vmatprep.subr.mxu0 %v196
  %249 = vmatpush2.msra.mxu0 %v195
  %250 = vmatprep.subr.mxu0 %v194
  %251 = vmatpush2.msra.mxu0 %v193
  %252 = vmatprep.subr.mxu0 %v192
  %253 = vmatpush2.msra.mxu0 %v191
  %254 = vmatprep.subr.mxu0 %v190
  %255 = vmatpush2.msra.mxu0 %v189
  %256 = vmatprep.subr.mxu0 %v188
  %257 = vmatpush2.msra.mxu0 %v187
  %258 = vmatprep.subr.mxu0 %v186
  %259 = vmatpush2.msra.mxu0 %v185
  %260 = vmatprep.subr.mxu0 %v184
  %261 = vmatpush2.msra.mxu0 %v183
  %262 = vmatprep.subr.mxu0 %v182
  %263 = vmatpush2.msra.mxu0 %v181
  %264 = vmatprep.subr.mxu0 %v180
  %265 = vmatpush2.msra.mxu0 %v179
  %266 = vmatprep.subr.mxu0 %v178
  %267 = vmatpush2.msra.mxu0 %v177
  %268 = vmatprep.subr.mxu0 %v176
  %269 = vmatpush2.msra.mxu0 %v175
  %270 = vmatprep.subr.mxu0 %v174
  %271 = vmatpush2.msra.mxu0 %v173
  %272 = vmatprep.subr.mxu0 %v172
  %273 = vmatpush2.msra.mxu0 %v171
  %274 = vmatprep.subr.mxu0 %v170
  %275 = vmatpush2.msra.mxu0 %v169
  %276 = vmatprep.mubr.f32.mxu0 %v136
  %277 = vmatmul.mubr.f32.gmra.mxu0 %v135
  %v278 = vpop.f32.mrf.mxu0
  %v279 = vadd.f32 %v205, %v278
  %v280 = vpop.f32.mrf.mxu0
  %v281 = vadd.f32 %v209, %v280
  %282 = vdwg.mxu0
  %v283 = vmax.f32 %v279, 0.0
  %v284 = vmax.f32 %v281, 0.0
  %v285 = vld [vmem:[%s3] sm:$0xff]
  %v286 = vld [vmem:[%s3 + $0x8] sm:$0xff]
  %v287 = vld [vmem:[%s3 + $0x10] sm:$0xff]
  %v288 = vld [vmem:[%s3 + $0x18] sm:$0xff]
  %v289 = vld [vmem:[%s3 + $0x20] sm:$0xff]
  %v290 = vld [vmem:[%s3 + $0x28] sm:$0xff]
  %v291 = vld [vmem:[%s3 + $0x30] sm:$0xff]
  %v292 = vld [vmem:[%s3 + $0x38] sm:$0xff]
  %v293 = vld [vmem:[%s3 + $0x40] sm:$0xff]
  %v294 = vld [vmem:[%s3 + $0x48] sm:$0xff]
  %v295 = vld [vmem:[%s3 + $0x50] sm:$0xff]
  %v296 = vld [vmem:[%s3 + $0x58] sm:$0xff]
  %v297 = vld [vmem:[%s3 + $0x60] sm:$0xff]
  %v298 = vld [vmem:[%s3 + $0x68] sm:$0xff]
  %v299 = vld [vmem:[%s3 + $0x70] sm:$0xff]
  %v300 = vld [vmem:[%s3 + $0x78] sm:$0xff]
  %v301 = vld [vmem:[%s3 + $0x80] sm:$0xff]
  %v302 = vld [vmem:[%s3 + $0x88] sm:$0xff]
  %v303 = vld [vmem:[%s3 + $0x90] sm:$0xff]
  %v304 = vld [vmem:[%s3 + $0x98] sm:$0xff]
  %v305 = vld [vmem:[%s3 + $0xa0] sm:$0xff]
  %v306 = vld [vmem:[%s3 + $0xa8] sm:$0xff]
  %v307 = vld [vmem:[%s3 + $0xb0] sm:$0xff]
  %v308 = vld [vmem:[%s3 + $0xb8] sm:$0xff]
  %v309 = vld [vmem:[%s3 + $0xc0] sm:$0xff]
  %v310 = vld [vmem:[%s3 + $0xc8] sm:$0xff]
  %v311 = vld [vmem:[%s3 + $0xd0] sm:$0xff]
  %v312 = vld [vmem:[%s3 + $0xd8] sm:$0xff]
  %v313 = vld [vmem:[%s3 + $0xe0] sm:$0xff]
  %v314 = vld [vmem:[%s3 + $0xe8] sm:$0xff]
  %v315 = vld [vmem:[%s3 + $0xf0] sm:$0xff]
  %v316 = vld [vmem:[%s3 + $0xf8] sm:$0xff]
  %v317 = vlaneseq
  %v318 = vshrl.u32 %v317, 7
  %v319 = vsub.s32 0, %v318
  %v320 = vrot.slane %v30, %v319
  %321 = vmatprep.subr.mxu0 0.0
  %322 = vmatpush1.msra.mxu0 %v300
  %323 = vmatprep.subr.mxu0 0.0
  %324 = vmatpush1.msra.mxu0 %v299
  %325 = vmatprep.subr.mxu0 0.0
  %326 = vmatpush1.msra.mxu0 %v298
  %327 = vmatprep.subr.mxu0 0.0
  %328 = vmatpush1.msra.mxu0 %v297
  %329 = vmatprep.subr.mxu0 0.0
  %330 = vmatpush1.msra.mxu0 %v296
  %331 = vmatprep.subr.mxu0 0.0
  %332 = vmatpush1.msra.mxu0 %v295
  %333 = vmatprep.subr.mxu0 0.0
  %334 = vmatpush1.msra.mxu0 %v294
  %335 = vmatprep.subr.mxu0 0.0
  %336 = vmatpush1.msra.mxu0 %v293
  %337 = vmatprep.subr.mxu0 0.0
  %338 = vmatpush1.msra.mxu0 %v292
  %339 = vmatprep.subr.mxu0 0.0
  %340 = vmatpush1.msra.mxu0 %v291
  %341 = vmatprep.subr.mxu0 0.0
  %342 = vmatpush1.msra.mxu0 %v290
  %343 = vmatprep.subr.mxu0 0.0
  %344 = vmatpush1.msra.mxu0 %v289
  %345 = vmatprep.subr.mxu0 0.0
  %346 = vmatpush1.msra.mxu0 %v288
  %347 = vmatprep.subr.mxu0 0.0
  %348 = vmatpush1.msra.mxu0 %v287
  %349 = vmatprep.subr.mxu0 0.0
  %350 = vmatpush1.msra.mxu0 %v286
  %351 = vmatprep.subr.mxu0 0.0
  %352 = vmatpush1.msra.mxu0 %v285
  %353 = vmatprep.subr.mxu0 0.0
  %354 = vmatpush2.msra.mxu0 %v316
  %355 = vmatprep.subr.mxu0 0.0
  %356 = vmatpush2.msra.mxu0 %v315
  %357 = vmatprep.subr.mxu0 0.0
  %358 = vmatpush2.msra.mxu0 %v314
  %359 = vmatprep.subr.mxu0 0.0
  %360 = vmatpush2.msra.mxu0 %v313
  %361 = vmatprep.subr.mxu0 0.0
  %362 = vmatpush2.msra.mxu0 %v312
  %363 = vmatprep.subr.mxu0 0.0
  %364 = vmatpush2.msra.mxu0 %v311
  %365 = vmatprep.subr.mxu0 0.0
  %366 = vmatpush2.msra.mxu0 %v310
  %367 = vmatprep.subr.mxu0 0.0
  %368 = vmatpush2.msra.mxu0 %v309
  %369 = vmatprep.subr.mxu0 0.0
  %370 = vmatpush2.msra.mxu0 %v308
  %371 = vmatprep.subr.mxu0 0.0
  %372 = vmatpush2.msra.mxu0 %v307
  %373 = vmatprep.subr.mxu0 0.0
  %374 = vmatpush2.msra.mxu0 %v306
  %375 = vmatprep.subr.mxu0 0.0
  %376 = vmatpush2.msra.mxu0 %v305
  %377 = vmatprep.subr.mxu0 0.0
  %378 = vmatpush2.msra.mxu0 %v304
  %379 = vmatprep.subr.mxu0 0.0
  %380 = vmatpush2.msra.mxu0 %v303
  %381 = vmatprep.subr.mxu0 0.0
  %382 = vmatpush2.msra.mxu0 %v302
  %383 = vmatprep.subr.mxu0 0.0
  %384 = vmatpush2.msra.mxu0 %v301
  %385 = vmatprep.mubr.f32.mxu0 %v284
  %386 = vmatmul.mubr.f32.gmra.mxu0 %v283
  %v387 = vpop.f32.mrf.mxu0
  %v388 = vadd.f32 %v320, %v387
  %v389 = vpop.f32.mrf.mxu0
  %390 = vdwg.mxu0
  %v391 = vld [vmem:[%s4] sm:$0xff]
  %v392 = vld [vmem:[%s4 + $0x8] sm:$0xff]
  %v393 = vld [vmem:[%s4 + $0x10] sm:$0xff]
  %v394 = vld [vmem:[%s4 + $0x18] sm:$0xff]
  %v395 = vld [vmem:[%s4 + $0x20] sm:$0xff]
  %v396 = vld [vmem:[%s4 + $0x28] sm:$0xff]
  %v397 = vld [vmem:[%s4 + $0x30] sm:$0xff]
  %v398 = vld [vmem:[%s4 + $0x38] sm:$0xff]
  %v399 = vld [vmem:[%s4 + $0x40] sm:$0xff]
  %v400 = vld [vmem:[%s4 + $0x48] sm:$0xff]
  %v401 = vld [vmem:[%s4 + $0x50] sm:$0xff]
  %v402 = vld [vmem:[%s4 + $0x58] sm:$0xff]
  %v403 = vld [vmem:[%s4 + $0x60] sm:$0xff]
  %v404 = vld [vmem:[%s4 + $0x68] sm:$0xff]
  %v405 = vld [vmem:[%s4 + $0x70] sm:$0xff]
  %v406 = vld [vmem:[%s4 + $0x78] sm:$0xff]
  %407 = vmatprep.subr.mxu0 0.0
  %408 = vmatpush1.msra.mxu0 %v406
  %409 = vmatprep.subr.mxu0 0.0
  %410 = vmatpush1.msra.mxu0 %v405
  %411 = vmatprep.subr.mxu0 0.0
  %412 = vmatpush1.msra.mxu0 %v404
  %413 = vmatprep.subr.mxu0 0.0
  %414 = vmatpush1.msra.mxu0 %v403
  %415 = vmatprep.subr.mxu0 0.0
  %416 = vmatpush1.msra.mxu0 %v402
  %417 = vmatprep.subr.mxu0 0.0
  %418 = vmatpush1.msra.mxu0 %v401
  %419 = vmatprep.subr.mxu0 0.0
  %420 = vmatpush1.msra.mxu0 %v400
  %421 = vmatprep.subr.mxu0 0.0
  %422 = vmatpush1.msra.mxu0 %v399
  %423 = vmatprep.subr.mxu0 0.0
  %424 = vmatpush1.msra.mxu0 %v398
  %425 = vmatprep.subr.mxu0 0.0
  %426 = vmatpush1.msra.mxu0 %v397
  %427 = vmatprep.subr.mxu0 0.0
  %428 = vmatpush1.msra.mxu0 %v396
  %429 = vmatprep.subr.mxu0 0.0
  %430 = vmatpush1.msra.mxu0 %v395
  %431 = vmatprep.subr.mxu0 0.0
  %432 = vmatpush1.msra.mxu0 %v394
  %433 = vmatprep.subr.mxu0 0.0
  %434 = vmatpush1.msra.mxu0 %v393
  %435 = vmatprep.subr.mxu0 0.0
  %436 = vmatpush1.msra.mxu0 %v392
  %437 = vmatprep.subr.mxu0 0.0
  %438 = vmatpush1.msra.mxu0 %v391
  %439 = vmatprep.subr.mxu0 0.0
  %440 = vmatpush2.msra.mxu0 0.0
  %441 = vmatprep.subr.mxu0 0.0
  %442 = vmatpush2.msra.mxu0 0.0
  %443 = vmatprep.subr.mxu0 0.0
  %444 = vmatpush2.msra.mxu0 0.0
  %445 = vmatprep.subr.mxu0 0.0
  %446 = vmatpush2.msra.mxu0 0.0
  %447 = vmatprep.subr.mxu0 0.0
  %448 = vmatpush2.msra.mxu0 0.0
  %449 = vmatprep.subr.mxu0 0.0
  %450 = vmatpush2.msra.mxu0 0.0
  %451 = vmatprep.subr.mxu0 0.0
  %452 = vmatpush2.msra.mxu0 0.0
  %453 = vmatprep.subr.mxu0 0.0
  %454 = vmatpush2.msra.mxu0 0.0
  %455 = vmatprep.subr.mxu0 0.0
  %456 = vmatpush2.msra.mxu0 0.0
  %457 = vmatprep.subr.mxu0 0.0
  %458 = vmatpush2.msra.mxu0 0.0
  %459 = vmatprep.subr.mxu0 0.0
  %460 = vmatpush2.msra.mxu0 0.0
  %461 = vmatprep.subr.mxu0 0.0
  %462 = vmatpush2.msra.mxu0 0.0
  %463 = vmatprep.subr.mxu0 0.0
  %464 = vmatpush2.msra.mxu0 0.0
  %465 = vmatprep.subr.mxu0 0.0
  %466 = vmatpush2.msra.mxu0 0.0
  %467 = vmatprep.subr.mxu0 0.0
  %468 = vmatpush2.msra.mxu0 0.0
  %469 = vmatprep.subr.mxu0 0.0
  %470 = vmatpush2.msra.mxu0 0.0
  %471 = vmatprep.mubr.f32.mxu0 0.0
  %472 = vmatmul.mubr.f32.gmra.mxu0 %v388
  %v473 = vpop.f32.mrf.mxu0
  %v474 = vadd.f32 0.0, %v473
  %v475 = vpop.f32.mrf.mxu0
  %476 = vdwg.mxu0
  %v477 = vmul.f32 %v474, 0.03125
  %v478 = vsub.f32 %v388, %v477
  %v479 = vmul.f32 %v478, %v478
  %480 = vmatprep.subr.mxu0 0.0
  %481 = vmatpush1.msra.mxu0 %v406
  %482 = vmatprep.subr.mxu0 0.0
  %483 = vmatpush1.msra.mxu0 %v405
  %484 = vmatprep.subr.mxu0 0.0
  %485 = vmatpush1.msra.mxu0 %v404
  %486 = vmatprep.subr.mxu0 0.0
  %487 = vmatpush1.msra.mxu0 %v403
  %488 = vmatprep.subr.mxu0 0.0
  %489 = vmatpush1.msra.mxu0 %v402
  %490 = vmatprep.subr.mxu0 0.0
  %491 = vmatpush1.msra.mxu0 %v401
  %492 = vmatprep.subr.mxu0 0.0
  %493 = vmatpush1.msra.mxu0 %v400
  %494 = vmatprep.subr.mxu0 0.0
  %495 = vmatpush1.msra.mxu0 %v399
  %496 = vmatprep.subr.mxu0 0.0
  %497 = vmatpush1.msra.mxu0 %v398
  %498 = vmatprep.subr.mxu0 0.0
  %499 = vmatpush1.msra.mxu0 %v397
  %500 = vmatprep.subr.mxu0 0.0
  %501 = vmatpush1.msra.mxu0 %v396
  %502 = vmatprep.subr.mxu0 0.0
  %503 = vmatpush1.msra.mxu0 %v395
  %504 = vmatprep.subr.mxu0 0.0
  %505 = vmatpush1.msra.mxu0 %v394
  %506 = vmatprep.subr.mxu0 0.0
  %507 = vmatpush1.msra.mxu0 %v393
  %508 = vmatprep.subr.mxu0 0.0
  %509 = vmatpush1.msra.mxu0 %v392
  %510 = vmatprep.subr.mxu0 0.0
  %511 = vmatpush1.msra.mxu0 %v391
  %512 = vmatprep.subr.mxu0 0.0
  %513 = vmatpush2.msra.mxu0 0.0
  %514 = vmatprep.subr.mxu0 0.0
  %515 = vmatpush2.msra.mxu0 0.0
  %516 = vmatprep.subr.mxu0 0.0
  %517 = vmatpush2.msra.mxu0 0.0
  %518 = vmatprep.subr.mxu0 0.0
  %519 = vmatpush2.msra.mxu0 0.0
  %520 = vmatprep.subr.mxu0 0.0
  %521 = vmatpush2.msra.mxu0 0.0
  %522 = vmatprep.subr.mxu0 0.0
  %523 = vmatpush2.msra.mxu0 0.0
  %524 = vmatprep.subr.mxu0 0.0
  %525 = vmatpush2.msra.mxu0 0.0
  %526 = vmatprep.subr.mxu0 0.0
  %527 = vmatpush2.msra.mxu0 0.0
  %528 = vmatprep.subr.mxu0 0.0
  %529 = vmatpush2.msra.mxu0 0.0
  %530 = vmatprep.subr.mxu0 0.0
  %531 = vmatpush2.msra.mxu0 0.0
  %532 = vmatprep.subr.mxu0 0.0
  %533 = vmatpush2.msra.mxu0 0.0
  %534 = vmatprep.subr.mxu0 0.0
  %535 = vmatpush2.msra.mxu0 0.0
  %536 = vmatprep.subr.mxu0 0.0
  %537 = vmatpush2.msra.mxu0 0.0
  %538 = vmatprep.subr.mxu0 0.0
  %539 = vmatpush2.msra.mxu0 0.0
  %540 = vmatprep.subr.mxu0 0.0
  %541 = vmatpush2.msra.mxu0 0.0
  %542 = vmatprep.subr.mxu0 0.0
  %543 = vmatpush2.msra.mxu0 0.0
  %544 = vmatprep.mubr.f32.mxu0 0.0
  %545 = vmatmul.mubr.f32.gmra.mxu0 %v479
  %v546 = vpop.f32.mrf.mxu0
  %v547 = vadd.f32 0.0, %v546
  %v548 = vpop.f32.mrf.mxu0
  %549 = vdwg.mxu0
  %v550 = vmul.f32 %v547, 0.03125
  %v551 = vadd.f32 %v550, 1e-05
  %v552 = vrsqrt.pop %v551
  %v553 = vmul.f32 %v478, %v552
  %v554 = vlaneseq
  %v555 = vshrl.u32 %v554, 7
  %v556 = vsub.s32 0, %v555
  %v557 = vrot.slane %v31, %v556
  %v558 = vmul.f32 %v553, %v557
  %v559 = vlaneseq
  %v560 = vshrl.u32 %v559, 7
  %v561 = vsub.s32 0, %v560
  %v562 = vrot.slane %v32, %v561
  %v563 = vadd.f32 %v558, %v562
  %564 = vst [vmem:[%s7] sm:$0xff] %v563
  // Predicated region
  $region30: #{random_mlp_encoder.1} parent=0 // pred_check
    _
  $region31: #{random_mlp_encoder.1} parent=0 // pred_check_branch
    %566 = sbr.rel (0) target = $region33
  $region32: #{random_mlp_encoder.1} parent=0 // pred_region
    _
  $region33: #{random_mlp_encoder.1} parent=0 // pred_fallthru
    _
  // Predicated region
  $region34: #{random_mlp_encoder.1} parent=0 // pred_check
    _
  $region35: #{random_mlp_encoder.1} parent=0 // pred_check_branch
    %568 = sbr.rel (0) target = $region37
  $region36: #{random_mlp_encoder.1} parent=0 // pred_region
    _
  $region37: #{random_mlp_encoder.1} parent=0 // pred_fallthru
    _

</llo_original>
